<compile_context>
chip_gen: v7x
topology: tpu7x:2x2x1
jax: 0.10.0
libtpu: 0.0.40
codegen_flags: <defaults>
</compile_context>

<pallas_src>
import functools
from typing import NamedTuple, Optional

import jax
import jax.numpy as jnp
from jax import lax
from jax.experimental import pallas as pl
from jax.experimental.pallas import tpu as pltpu


# --------------------------------------------------------------------------
# small helpers
# --------------------------------------------------------------------------
def _round_up(x: int, m: int) -> int:
    return ((x + m - 1) // m) * m


@functools.lru_cache(maxsize=None)
def _device_kind() -> str:
    try:
        return jax.devices()[0].device_kind.lower()
    except Exception:
        return ""


def _is_old_gen(kind: str) -> bool:
    """v5e and older: 128x128 MXU, no bf16 VPU."""
    return any(t in kind for t in ("v2", "v3", "v4", "v5"))


def _is_v7(kind: str) -> bool:
    return "v7" in kind


def _feature_pad(d: int, pad_to_256: bool) -> int:
    """Lane-dense feature padding: 128 always, 256 on v6e/v7x for dims >= 256
    (2x256 MXU; odd multiples of 128 leave half the systolic array idle)."""
    p = _round_up(d, 128)
    if pad_to_256 and p >= 256:
        p = _round_up(d, 256)
    return p


@functools.lru_cache(maxsize=None)
def _single_buffer_params_supported() -> bool:
    """Explicit feature probe (review item): can grid-invariant operands be
    single-buffered via pipeline_mode=pl.Buffered(1) on this jax/libtpu combo?
    Tiny AOT lower+compile, run once per process; real kernel errors are NOT
    masked by this."""
    if not hasattr(pl, "Buffered"):
        return False
    try:
        const_spec = pl.BlockSpec((8, 128), lambda i: (0, 0),
                                  pipeline_mode=pl.Buffered(1))
    except TypeError:
        return False

    def _probe_kernel(w_ref, x_ref, o_ref):
        o_ref[...] = x_ref[...] + w_ref[...]

    try:
        fn = pl.pallas_call(
            _probe_kernel,
            out_shape=jax.ShapeDtypeStruct((16, 128), jnp.float32),
            grid_spec=pltpu.PrefetchScalarGridSpec(
                num_scalar_prefetch=0,
                grid=(2,),
                in_specs=[const_spec,
                          pl.BlockSpec((8, 128), lambda i: (i, 0))],
                out_specs=pl.BlockSpec((8, 128), lambda i: (i, 0)),
            ),
        )
        jax.jit(fn).lower(
            jax.ShapeDtypeStruct((8, 128), jnp.float32),
            jax.ShapeDtypeStruct((16, 128), jnp.float32),
        ).compile()
        return True
    except Exception:
        return False


# --------------------------------------------------------------------------
# one-time parameter preparation (hoisted out of the per-call path)
# --------------------------------------------------------------------------
class FFNParams(NamedTuple):
    w1: jax.Array        # (d_in_pad, d_hid_pad), matmul dtype, gamma folded in
    b1: jax.Array        # (1, d_hid_pad) f32, (beta @ w1 + b1) folded in
    w2: jax.Array        # (d_hid_pad, d_in_pad), matmul dtype
    b2: jax.Array        # (1, d_in_pad) f32
    d_in: int
    d_hid: int
    d_in_pad: int
    d_hid_pad: int


def prepare_pre_ln_ffn_params(gamma, beta, w1, b1, w2, b2, *,
                              matmul_dtype=jnp.bfloat16,
                              pad_to_256: Optional[bool] = None) -> FFNParams:
    """Pad + cast weights ONCE (not per forward call) and fold the LayerNorm
    affine into the first linear:  w1' = gamma[:,None]*w1, b1' = beta@w1 + b1.
    Exact in f32; padded gamma/beta/bias lanes and padded weight rows/cols are
    zero, so padded feature lanes stay exactly zero through the whole FFN."""
    d_in, d_hid = int(w1.shape[0]), int(w1.shape[1])
    if pad_to_256 is None:
        pad_to_256 = not _is_old_gen(_device_kind())
    d_in_p = _feature_pad(d_in, pad_to_256)
    d_hid_p = _feature_pad(d_hid, pad_to_256)

    f32 = jnp.float32
    gamma = gamma.astype(f32).reshape(d_in)
    beta = beta.astype(f32).reshape(d_in)
    w1f = w1.astype(f32)
    w2f = w2.astype(f32)

    w1_fold = gamma[:, None] * w1f                    # (d_in, d_hid)
    b1_fold = beta @ w1f + b1.astype(f32)             # (d_hid,)

    w1p = jnp.pad(w1_fold, ((0, d_in_p - d_in),
                            (0, d_hid_p - d_hid))).astype(matmul_dtype)
    b1p = jnp.pad(b1_fold.reshape(1, d_hid), ((0, 0), (0, d_hid_p - d_hid)))
    w2p = jnp.pad(w2f, ((0, d_hid_p - d_hid),
                        (0, d_in_p - d_in))).astype(matmul_dtype)
    b2p = jnp.pad(b2.astype(f32).reshape(1, d_in), ((0, 0), (0, d_in_p - d_in)))

    return FFNParams(w1p, b1p, w2p, b2p, d_in, d_hid, d_in_p, d_hid_p)


# --------------------------------------------------------------------------
# kernel
# --------------------------------------------------------------------------
def _ffn_kernel(x_ref, w1_ref, b1_ref, w2_ref, b2_ref, o_ref, *,
                d_in: int, d_in_pad: int, mm_dtype, hidden_dtype, slope: float):
    """One row-tile of: residual + w2(leaky_relu(w1(LayerNorm(x))))."""
    x = x_ref[...].astype(jnp.float32)                 # (tm, d_in_pad)

    # ---- LayerNorm statistics (eps=1e-6, biased variance) -----------------
    inv_d = 1.0 / d_in
    mean = jnp.sum(x, axis=-1, keepdims=True) * inv_d   # padded lanes are 0
    cent = x - mean
    ssq = jnp.sum(cent * cent, axis=-1, keepdims=True)
    if d_in_pad > d_in:
        # Padded lanes of cent equal -mean: remove their contribution with a
        # scalar correction instead of a full-tile mask (VPU-slot savings).
        ssq = ssq - (d_in_pad - d_in) * (mean * mean)
        ssq = jnp.maximum(ssq, 0.0)                      # guard f32 rounding
    var = ssq * inv_d
    # gamma/beta are folded into w1/b1 (host-side, once) -> no affine here.
    xn = cent * lax.rsqrt(var + 1e-6)

    # ---- w_1: MXU, f32 accumulation ---------------------------------------
    h = jnp.dot(xn.astype(mm_dtype), w1_ref[...],
                preferred_element_type=jnp.float32)

    # ---- bias + leaky_relu on the (tm, d_hid) tile -------------------------
    # bf16 on v6e/v7x (bf16-native VALU, halves vreg count), f32 on v5e.
    h = h.astype(hidden_dtype)
    h = h + b1_ref[...].astype(hidden_dtype)
    h = jnp.maximum(h, slope * h)                        # leaky_relu (exact)

    # ---- w_2 ---------------------------------------------------------------
    y = jnp.dot(h.astype(mm_dtype), w2_ref[...],
                preferred_element_type=jnp.float32) + b2_ref[...]

    # ---- residual add -------------------------------------------------------
    o_ref[...] = (y + x).astype(o_ref.dtype)


# --------------------------------------------------------------------------
# wrapper
# --------------------------------------------------------------------------
def pre_ln_ffn(x, params: FFNParams, *,
               tm: Optional[int] = None,
               hidden_dtype=None,
               negative_slope: float = 0.01,
               vmem_limit_bytes: Optional[int] = None,
               donate_input: bool = False):
    """x: (..., d_in) -> (..., d_in)   (pre-LN FFN with residual)."""
    d_in, d_in_p = params.d_in, params.d_in_pad
    d_hid_p = params.d_hid_pad
    assert int(x.shape[-1]) == d_in, "last dim of x must equal d_in"

    orig_shape = x.shape
    x2 = x.reshape(-1, d_in)
    n = int(x2.shape[0])

    kind = _device_kind()
    old_gen = _is_old_gen(kind)
    is_v7 = _is_v7(kind)

    mm_dtype = params.w1.dtype
    if hidden_dtype is None:
        hidden_dtype = (jnp.float32
                        if (old_gen or mm_dtype == jnp.dtype(jnp.float32))
                        else jnp.bfloat16)

    # ---- row tile selection (chip-aware; sweepable via `tm`) ---------------
    if tm is None:
        tm = 256 if is_v7 else 512        # v7x: only 64 MiB VMEM / TC
    tm_eff = max(8, (min(tm, _round_up(n, 8)) // 8) * 8)
    if is_v7 and n >= 16:
        # Ensure >= 2 grid steps so dimension_semantics=("parallel",) can
        # split row tiles across both v7x TensorCores.
        tm_eff = max(8, min(tm_eff, _round_up(pl.cdiv(n, 2), 8)))
    grid_m = pl.cdiv(n, tm_eff)           # ragged n: last tile partial (rows
                                          # past n are garbage and discarded)

    # ---- feature padding: only when d_in is not lane-aligned ---------------
    pad_feat = d_in_p > d_in
    xp = jnp.pad(x2, ((0, 0), (0, d_in_p - d_in))) if pad_feat else x2

    kernel = functools.partial(
        _ffn_kernel, d_in=d_in, d_in_pad=d_in_p,
        mm_dtype=mm_dtype, hidden_dtype=hidden_dtype, slope=negative_slope)

    single_buf = _single_buffer_params_supported()

    def const_spec(shape):
        if single_buf:
            return pl.BlockSpec(shape, lambda i: (0, 0),
                                pipeline_mode=pl.Buffered(1))
        return pl.BlockSpec(shape, lambda i: (0, 0))

    # ---- VMEM budget: actual footprint + margin, capped below physical -----
    x_item = jnp.dtype(x2.dtype).itemsize
    o_item = jnp.dtype(x.dtype).itemsize
    h_item = jnp.dtype(hidden_dtype).itemsize
    nbuf_w = 1 if single_buf else 2
    w_bytes = nbuf_w * (int(params.w1.size) * params.w1.dtype.itemsize
                        + int(params.w2.size) * params.w2.dtype.itemsize
                        + int(params.b1.size) * 4 + int(params.b2.size) * 4)
    io_bytes = 2 * tm_eff * d_in_p * (x_item + o_item)       # double-buffered
    live_bytes = tm_eff * d_hid_p * (4 + h_item) + 4 * tm_eff * d_in_p * 4
    footprint = w_bytes + io_bytes + live_bytes
    if vmem_limit_bytes is None:
        cap = (56 if is_v7 else 100) * 1024 * 1024
        vmem_limit_bytes = int(min(cap, max(32 * 1024 * 1024,
                                            int(footprint * 1.5) + (8 << 20))))

    # ---- advisory cost estimate ---------------------------------------------
    cost = pl.CostEstimate(
        flops=4 * n * d_in_p * d_hid_p,
        transcendentals=n,
        bytes_accessed=int(int(xp.size) * x_item + n * d_in_p * o_item
                           + w_bytes // nbuf_w))

    # Alias x -> out (saves a second HBM activation buffer). Always safe when
    # xp is a fresh padded buffer; for the zero-copy fast path only when the
    # caller explicitly donates x.
    alias = {0: 0} if (pad_feat or donate_input) else {}

    out = pl.pallas_call(
        kernel,
        out_shape=jax.ShapeDtypeStruct((n, d_in_p), x.dtype),
        grid_spec=pltpu.PrefetchScalarGridSpec(
            num_scalar_prefetch=0,
            grid=(grid_m,),
            in_specs=[
                pl.BlockSpec((tm_eff, d_in_p), lambda i: (i, 0)),   # x tile
                const_spec((d_in_p, d_hid_p)),                      # w1 (folded)
                const_spec((1, d_hid_p)),                           # b1 (folded)
                const_spec((d_hid_p, d_in_p)),                      # w2
                const_spec((1, d_in_p)),                            # b2
            ],
            out_specs=pl.BlockSpec((tm_eff, d_in_p), lambda i: (i, 0)),
        ),
        compiler_params=pltpu.CompilerParams(
            dimension_semantics=("parallel",),
            vmem_limit_bytes=vmem_limit_bytes),
        cost_estimate=cost,
        input_output_aliases=alias,
    )(xp, params.w1, params.b1, params.w2, params.b2)

    if pad_feat:
        out = out[:, :d_in]
    return out.reshape(orig_shape)


# --------------------------------------------------------------------------
# pure-JAX reference (exact PyTorch semantics, f32)
# --------------------------------------------------------------------------
def _reference(x, gamma, beta, w1, b1, w2, b2):
    mean = jnp.mean(x, axis=-1, keepdims=True)
    var = jnp.mean((x - mean) ** 2, axis=-1, keepdims=True)
    xn = (x - mean) / jnp.sqrt(var + 1e-6) * gamma + beta
    h = xn @ w1 + b1
    h = jnp.where(h >= 0, h, 0.01 * h)
    return h @ w2 + b2 + x


if __name__ == "__main__":
    key = jax.random.PRNGKey(0)
    batch, seq, d_in, d_hid = 2, 8, 32, 64

    kx, kg, kb, k1, kb1, k2, kb2 = jax.random.split(key, 7)
    x = jax.random.normal(kx, (batch, seq, d_in), dtype=jnp.float32)

    # Deterministic parameter init (nn.Linear-style uniform bounds), plus
    # non-trivial gamma/beta to exercise the LayerNorm-affine fold.
    lim1 = 1.0 / (d_in ** 0.5)
    lim2 = 1.0 / (d_hid ** 0.5)
    w1 = jax.random.uniform(k1, (d_in, d_hid), jnp.float32, -lim1, lim1)
    b1 = jax.random.uniform(kb1, (d_hid,), jnp.float32, -lim1, lim1)
    w2 = jax.random.uniform(k2, (d_hid, d_in), jnp.float32, -lim2, lim2)
    b2 = jax.random.uniform(kb2, (d_in,), jnp.float32, -lim2, lim2)
    gamma = 1.0 + 0.1 * jax.random.normal(kg, (d_in,), jnp.float32)
    beta = 0.1 * jax.random.normal(kb, (d_in,), jnp.float32)

    # Reference computed first (robust against any future input donation).
    ref = _reference(x, gamma, beta, w1, b1, w2, b2)

    # One-time parameter prep (hoisted out of the per-call path), then apply.
    params = prepare_pre_ln_ffn_params(gamma, beta, w1, b1, w2, b2)
    out = pre_ln_ffn(x, params)
    jax.block_until_ready(out)

    assert out.shape == x.shape
    max_err = float(jnp.max(jnp.abs(out - ref)))
    # bf16 MXU operands / bf16 hidden elementwise (f32 accumulation) -> looser tol.
    assert jnp.allclose(out, ref, atol=5e-2, rtol=5e-2), (
        f"mismatch vs reference (max abs err {max_err})")

    print("KERNEL_OK")
</pallas_src>

<mosaic_0001>
module attributes {stable_mosaic.version = 11 : i64} {
  func.func @_ffn_kernel(%arg0: i32, %arg1: memref<16x128xf32, #tpu.memory_space<vmem>>, %arg2: memref<128x128xbf16, #tpu.memory_space<vmem>>, %arg3: memref<1x128xf32, #tpu.memory_space<vmem>>, %arg4: memref<128x128xbf16, #tpu.memory_space<vmem>>, %arg5: memref<1x128xf32, #tpu.memory_space<vmem>>, %arg6: memref<16x128xf32, #tpu.memory_space<vmem>>) attributes {dimension_semantics = [#tpu.dimension_semantics<parallel>], iteration_bounds = array<i64: 1>, scalar_prefetch = 0 : i64, scratch_operands = 0 : i64, tpu.core_type = #tpu.core_type<tc>, window_params = [{transform_indices = @transform_0, window_bounds = array<i64: 16, 128>}, {pipeline_mode = #tpu.pipeline_mode<synchronous>, transform_indices = @transform_1, window_bounds = array<i64: 128, 128>}, {pipeline_mode = #tpu.pipeline_mode<synchronous>, transform_indices = @transform_2, window_bounds = array<i64: 1, 128>}, {pipeline_mode = #tpu.pipeline_mode<synchronous>, transform_indices = @transform_3, window_bounds = array<i64: 128, 128>}, {pipeline_mode = #tpu.pipeline_mode<synchronous>, transform_indices = @transform_4, window_bounds = array<i64: 1, 128>}, {transform_indices = @transform_5, window_bounds = array<i64: 16, 128>}]} {
    %c0 = arith.constant 0 : index
    %c0_0 = arith.constant 0 : index
    %0 = vector.load %arg1[%c0, %c0_0] : memref<16x128xf32, #tpu.memory_space<vmem>>, vector<16x128xf32>
    %cst = arith.constant dense<0.000000e+00> : vector<16xf32>
    %1 = vector.multi_reduction <add>, %0, %cst [1] : vector<16x128xf32> to vector<16xf32>
    %2 = vector.shape_cast %1 : vector<16xf32> to vector<16x1xf32>
    %cst_1 = arith.constant 3.125000e-02 : f32
    %3 = vector.broadcast %cst_1 : f32 to vector<16x1xf32>
    %4 = arith.mulf %2, %3 : vector<16x1xf32>
    %5 = vector.broadcast %4 : vector<16x1xf32> to vector<16x128xf32>
    %6 = arith.subf %0, %5 : vector<16x128xf32>
    %7 = arith.mulf %6, %6 : vector<16x128xf32>
    %cst_2 = arith.constant dense<0.000000e+00> : vector<16xf32>
    %8 = vector.multi_reduction <add>, %7, %cst_2 [1] : vector<16x128xf32> to vector<16xf32>
    %9 = vector.shape_cast %8 : vector<16xf32> to vector<16x1xf32>
    %10 = arith.mulf %4, %4 : vector<16x1xf32>
    %cst_3 = arith.constant 9.600000e+01 : f32
    %11 = vector.broadcast %cst_3 : f32 to vector<16x1xf32>
    %12 = arith.mulf %11, %10 : vector<16x1xf32>
    %13 = arith.subf %9, %12 : vector<16x1xf32>
    %cst_4 = arith.constant 0.000000e+00 : f32
    %14 = vector.broadcast %cst_4 : f32 to vector<16x1xf32>
    %15 = arith.maximumf %13, %14 : vector<16x1xf32>
    %cst_5 = arith.constant 3.125000e-02 : f32
    %16 = vector.broadcast %cst_5 : f32 to vector<16x1xf32>
    %17 = arith.mulf %15, %16 : vector<16x1xf32>
    %cst_6 = arith.constant 9.99999997E-7 : f32
    %18 = vector.broadcast %cst_6 : f32 to vector<16x1xf32>
    %19 = arith.addf %17, %18 : vector<16x1xf32>
    %20 = math.rsqrt %19 : vector<16x1xf32>
    %21 = vector.broadcast %20 : vector<16x1xf32> to vector<16x128xf32>
    %22 = arith.mulf %6, %21 : vector<16x128xf32>
    %23 = arith.truncf %22 : vector<16x128xf32> to vector<16x128xbf16>
    %c0_7 = arith.constant 0 : index
    %c0_8 = arith.constant 0 : index
    %24 = vector.load %arg2[%c0_7, %c0_8] : memref<128x128xbf16, #tpu.memory_space<vmem>>, vector<128x128xbf16>
    %cst_9 = arith.constant dense<0.000000e+00> : vector<16x128xf32>
    %25 = tpu.matmul %23, %24, %cst_9 {dimension_numbers = #tpu.dot_dimension_numbers<[1], [0], [0], [1], [0, 0, 1, 1], [], []>} : vector<16x128xbf16>, vector<128x128xbf16>, vector<16x128xf32> -> vector<16x128xf32>
    %26 = arith.truncf %25 : vector<16x128xf32> to vector<16x128xbf16>
    %c0_10 = arith.constant 0 : index
    %c0_11 = arith.constant 0 : index
    %27 = vector.load %arg3[%c0_10, %c0_11] : memref<1x128xf32, #tpu.memory_space<vmem>>, vector<1x128xf32>
    %28 = arith.truncf %27 : vector<1x128xf32> to vector<1x128xbf16>
    %29 = vector.broadcast %28 : vector<1x128xbf16> to vector<16x128xbf16>
    %30 = arith.addf %26, %29 : vector<16x128xbf16>
    %cst_12 = arith.constant 1.000980e-02 : bf16
    %31 = vector.broadcast %cst_12 : bf16 to vector<16x128xbf16>
    %32 = arith.mulf %31, %30 : vector<16x128xbf16>
    %33 = arith.maximumf %30, %32 : vector<16x128xbf16>
    %c0_13 = arith.constant 0 : index
    %c0_14 = arith.constant 0 : index
    %34 = vector.load %arg4[%c0_13, %c0_14] : memref<128x128xbf16, #tpu.memory_space<vmem>>, vector<128x128xbf16>
    %cst_15 = arith.constant dense<0.000000e+00> : vector<16x128xf32>
    %35 = tpu.matmul %33, %34, %cst_15 {dimension_numbers = #tpu.dot_dimension_numbers<[1], [0], [0], [1], [0, 0, 1, 1], [], []>} : vector<16x128xbf16>, vector<128x128xbf16>, vector<16x128xf32> -> vector<16x128xf32>
    %c0_16 = arith.constant 0 : index
    %c0_17 = arith.constant 0 : index
    %36 = vector.load %arg5[%c0_16, %c0_17] : memref<1x128xf32, #tpu.memory_space<vmem>>, vector<1x128xf32>
    %37 = vector.broadcast %36 : vector<1x128xf32> to vector<16x128xf32>
    %38 = arith.addf %35, %37 : vector<16x128xf32>
    %39 = arith.addf %38, %0 : vector<16x128xf32>
    %c0_18 = arith.constant 0 : index
    %c0_19 = arith.constant 0 : index
    %40 = vector.load %arg6[%c0_18, %c0_19] : memref<16x128xf32, #tpu.memory_space<vmem>>, vector<16x128xf32>
    tpu.vector_store %arg6[%c0_18, %c0_19], %39 {strides = array<i32>} : memref<16x128xf32, #tpu.memory_space<vmem>>, vector<16x128xf32>,
    return
  }
  func.func @transform_0(%arg0: i32) -> (i32, i32) {
    %c0_i32 = arith.constant 0 : i32
    %c0_i32_0 = arith.constant 0 : i32
    return %arg0, %c0_i32 : i32, i32
  }
  func.func @transform_1(%arg0: i32) -> (i32, i32) {
    %c0_i32 = arith.constant 0 : i32
    %c0_i32_0 = arith.constant 0 : i32
    %c0_i32_1 = arith.constant 0 : i32
    return %c0_i32, %c0_i32_0 : i32, i32
  }
  func.func @transform_2(%arg0: i32) -> (i32, i32) {
    %c0_i32 = arith.constant 0 : i32
    %c0_i32_0 = arith.constant 0 : i32
    %c0_i32_1 = arith.constant 0 : i32
    return %c0_i32, %c0_i32_0 : i32, i32
  }
  func.func @transform_3(%arg0: i32) -> (i32, i32) {
    %c0_i32 = arith.constant 0 : i32
    %c0_i32_0 = arith.constant 0 : i32
    %c0_i32_1 = arith.constant 0 : i32
    return %c0_i32, %c0_i32_0 : i32, i32
  }
  func.func @transform_4(%arg0: i32) -> (i32, i32) {
    %c0_i32 = arith.constant 0 : i32
    %c0_i32_0 = arith.constant 0 : i32
    %c0_i32_1 = arith.constant 0 : i32
    return %c0_i32, %c0_i32_0 : i32, i32
  }
  func.func @transform_5(%arg0: i32) -> (i32, i32) {
    %c0_i32 = arith.constant 0 : i32
    %c0_i32_0 = arith.constant 0 : i32
    return %arg0, %c0_i32 : i32, i32
  }
}

</mosaic_0001>

<llo_original>
// kernel: tpu_custom_call.1
$region0: #{tpu_custom_call.1}
  #allocation0 [shape = 'u32[]', space=smem, size = 0x4, offset = 0x4, fixed_abs, tag = 'smem constant byte address 0x4 - core index']
  #allocation1 [shape = 'u32[144,128]{1,0:T(1,128)}', space=vmem, size = 0x12000, scoped, tag = 'internal scratch']
  %s0 = inlined_call_operand.hbm [shape: f32[16,128], index: 0, kind: input, shape index: {}, may-alias: {0,5}]
  %s1 = inlined_call_operand.hbm [shape: bf16[128,128], index: 1, kind: input, shape index: {}]
  %s2 = inlined_call_operand.vmem [shape: f32[1,128], index: 2, kind: input, shape index: {}]
  %s3 = inlined_call_operand.hbm [shape: bf16[128,128], index: 3, kind: input, shape index: {}]
  %s4 = inlined_call_operand.vmem [shape: f32[1,128], index: 4, kind: input, shape index: {}]
  %s5 = inlined_call_operand.hbm [shape: f32[16,128], index: 5, kind: output, shape index: {}, may-alias: {0,5}]
  %s6 = sld [smem:[#allocation0]]
  $region42: #{tpu_custom_call.1} parent=0
    _
  %s8 = ssub.s32 1, %s6
  %s9 = scalar_select 0, %s8, %s6
  $region1: #{tpu_custom_call.1} parent=0
    #allocation2 [shape = 'u8[8192]{0}', space=vmem, size = 0x2000, scoped, tag = 'input window, operand 0, single buffered']
    #allocation3 [shape = 's32[1]{0}', space=sflag, size = 0x4, scoped, tag = 'scoped memory for tpu_custom_call.1']
    #allocation4 [shape = 's32[1]{0}', space=sflag, size = 0x4, scoped, tag = 'scoped memory for tpu_custom_call.1']
    #allocation5 [shape = 'u8[32768]{0}', space=vmem, size = 0x8000, scoped, tag = 'input window, operand 1, single buffered']
    #allocation6 [shape = 's32[1]{0}', space=sflag, size = 0x4, scoped, tag = 'scoped memory for tpu_custom_call.1']
    #allocation7 [shape = 'u8[32768]{0}', space=vmem, size = 0x8000, scoped, tag = 'input window, operand 3, single buffered']
    #allocation8 [shape = 'u8[8192]{0}', space=vmem, size = 0x2000, scoped, tag = 'output window, operand 0, single buffered']
    %10 = vsyncpa [#allocation3], 0
    %11 = vsyncpa [#allocation6], 0
    %12 = vsyncpa [#allocation4], 0
    // Predicated region
    $region2: #{tpu_custom_call.1} parent=1 // pred_check
      _
    $region3: #{tpu_custom_call.1} parent=1 // pred_check_branch
      %14 = sbr.rel (0) target = $region5
    $region4: #{tpu_custom_call.1} parent=1 // pred_region
      %s16 = ssub.s32 256, 256
      %17 = vsyncadd [#allocation3], %s16
      %s18 = sshll.u32 [#allocation2], 4
      %s19 = int_to_ptr.vmem [resolvable:$true] %s18
      %24 = dma.hbm_to_vmem [thread:$0]  %s0, 256, %s19, [#allocation3], 128, 128, 8
    $region5: #{tpu_custom_call.1} parent=1 // pred_fallthru
      _
    // Predicated region
    $region6: #{tpu_custom_call.1} parent=1 // pred_check
      _
    $region7: #{tpu_custom_call.1} parent=1 // pred_check_branch
      %26 = sbr.rel (0) target = $region9
    $region8: #{tpu_custom_call.1} parent=1 // pred_region
      %s28 = ssub.s32 1024, 1024
      %29 = vsyncadd [#allocation6], %s28
      %s30 = sshll.u32 [#allocation5], 4
      %s31 = int_to_ptr.vmem [resolvable:$true] %s30
      %36 = dma.hbm_to_vmem [thread:$0]  %s1, 1024, %s31, [#allocation6], 64, 64, 4
    $region9: #{tpu_custom_call.1} parent=1 // pred_fallthru
      _
    // Predicated region
    $region10: #{tpu_custom_call.1} parent=1 // pred_check
      _
    $region11: #{tpu_custom_call.1} parent=1 // pred_check_branch
      %38 = sbr.rel (0) target = $region13
    $region12: #{tpu_custom_call.1} parent=1 // pred_region
      _
    $region13: #{tpu_custom_call.1} parent=1 // pred_fallthru
      _
    // Predicated region
    $region14: #{tpu_custom_call.1} parent=1 // pred_check
      _
    $region15: #{tpu_custom_call.1} parent=1 // pred_check_branch
      %40 = sbr.rel (0) target = $region17
    $region16: #{tpu_custom_call.1} parent=1 // pred_region
      %s42 = ssub.s32 1024, 1024
      %43 = vsyncadd [#allocation6], %s42
      %s44 = sshll.u32 [#allocation7], 4
      %s45 = int_to_ptr.vmem [resolvable:$true] %s44
      %50 = dma.hbm_to_vmem [thread:$0]  %s3, 1024, %s45, [#allocation6], 64, 64, 4
    $region17: #{tpu_custom_call.1} parent=1 // pred_fallthru
      _
    // Predicated region
    $region18: #{tpu_custom_call.1} parent=1 // pred_check
      _
    $region19: #{tpu_custom_call.1} parent=1 // pred_check_branch
      %52 = sbr.rel (0) target = $region21
    $region20: #{tpu_custom_call.1} parent=1 // pred_region
      _
    $region21: #{tpu_custom_call.1} parent=1 // pred_fallthru
      _
    // Predicated region
    $region22: #{tpu_custom_call.1} parent=1 // pred_check
      _
    $region23: #{tpu_custom_call.1} parent=1 // pred_check_branch
      %54 = sbr.rel (0) target = $region25
    $region24: #{tpu_custom_call.1} parent=1 // pred_region
      %55 = dma.done [#allocation3], 256
    $region25: #{tpu_custom_call.1} parent=1 // pred_fallthru
      _
    // Predicated region
    $region26: #{tpu_custom_call.1} parent=1 // pred_check
      _
    $region27: #{tpu_custom_call.1} parent=1 // pred_check_branch
      %57 = sbr.rel (0) target = $region29
    $region28: #{tpu_custom_call.1} parent=1 // pred_region
      %58 = dma.done [#allocation6], 1024
    $region29: #{tpu_custom_call.1} parent=1 // pred_fallthru
      _
    // Predicated region
    $region30: #{tpu_custom_call.1} parent=1 // pred_check
      _
    $region31: #{tpu_custom_call.1} parent=1 // pred_check_branch
      %60 = sbr.rel (0) target = $region33
    $region32: #{tpu_custom_call.1} parent=1 // pred_region
      %61 = dma.done [#allocation6], 1024
    $region33: #{tpu_custom_call.1} parent=1 // pred_fallthru
      _
    %v64 = vld [vmem:[#allocation2] sm:$0xff]
    %v65 = vld [vmem:[#allocation2 + $0x8] sm:$0xff]
    %66 = vadd.xlane.f32.xlu0 %v64
    %v67 = vpop.xlane.xlu0 %66
    %68 = vadd.xlane.f32.xlu0 %v65
    %v69 = vpop.xlane.xlu0 %68
    %v70 = vmul.f32 %v67, 0.03125
    %v71 = vmul.f32 %v69, 0.03125
    %v72 = vsub.f32 %v64, %v70
    %v73 = vsub.f32 %v65, %v71
    %v74 = vmul.f32 %v72, %v72
    %v75 = vmul.f32 %v73, %v73
    %76 = vadd.xlane.f32.xlu0 %v74
    %v77 = vpop.xlane.xlu0 %76
    %78 = vadd.xlane.f32.xlu0 %v75
    %v79 = vpop.xlane.xlu0 %78
    %v80 = vmul.f32 %v70, %v70
    %v81 = vmul.f32 %v71, %v71
    %v82 = vmul.f32 %v80, 96.0
    %v83 = vmul.f32 %v81, 96.0
    %v84 = vsub.f32 %v77, %v82
    %v85 = vsub.f32 %v79, %v83
    %v86 = vmax.f32 %v84, 0.0
    %v87 = vmax.f32 %v85, 0.0
    %v88 = vmul.f32 %v86, 0.03125
    %v89 = vmul.f32 %v87, 0.03125
    %v90 = vadd.f32 %v88, 1e-06
    %v91 = vadd.f32 %v89, 1e-06
    %v92 = vrsqrt.pop %v90
    %v93 = vrsqrt.pop %v91
    %v94 = vmul.f32 %v72, %v92
    %v95 = vmul.f32 %v73, %v93
    %v96 = vpack.c.bf16 %v95, %v94
    %v97 = vld [vmem:[#allocation5] sm:$0xf]
    %v98 = vld [vmem:[#allocation5 + $0x4] sm:$0xf]
    %v99 = vld [vmem:[#allocation5 + $0x8] sm:$0xf]
    %v100 = vld [vmem:[#allocation5 + $0xc] sm:$0xf]
    %v101 = vld [vmem:[#allocation5 + $0x10] sm:$0xf]
    %v102 = vld [vmem:[#allocation5 + $0x14] sm:$0xf]
    %v103 = vld [vmem:[#allocation5 + $0x18] sm:$0xf]
    %v104 = vld [vmem:[#allocation5 + $0x1c] sm:$0xf]
    %v105 = vld [vmem:[#allocation5 + $0x20] sm:$0xf]
    %v106 = vld [vmem:[#allocation5 + $0x24] sm:$0xf]
    %v107 = vld [vmem:[#allocation5 + $0x28] sm:$0xf]
    %v108 = vld [vmem:[#allocation5 + $0x2c] sm:$0xf]
    %v109 = vld [vmem:[#allocation5 + $0x30] sm:$0xf]
    %v110 = vld [vmem:[#allocation5 + $0x34] sm:$0xf]
    %v111 = vld [vmem:[#allocation5 + $0x38] sm:$0xf]
    %v112 = vld [vmem:[#allocation5 + $0x3c] sm:$0xf]
    %v129 = vunpack.c.l.b16 %v97
    %v130 = vunpack.c.l.b16 %v98
    %v131 = vunpack.c.l.b16 %v99
    %v132 = vunpack.c.l.b16 %v100
    %v133 = vunpack.c.l.b16 %v101
    %v134 = vunpack.c.l.b16 %v102
    %v135 = vunpack.c.l.b16 %v103
    %v136 = vunpack.c.l.b16 %v104
    %v137 = vunpack.c.l.b16 %v105
    %v138 = vunpack.c.l.b16 %v106
    %v139 = vunpack.c.l.b16 %v107
    %v140 = vunpack.c.l.b16 %v108
    %v141 = vunpack.c.l.b16 %v109
    %v142 = vunpack.c.l.b16 %v110
    %v143 = vunpack.c.l.b16 %v111
    %v144 = vunpack.c.l.b16 %v112
    %v145 = vpack.c.b16 %v130, %v129
    %v146 = vpack.c.b16 %v132, %v131
    %v147 = vpack.c.b16 %v134, %v133
    %v148 = vpack.c.b16 %v136, %v135
    %v149 = vpack.c.b16 %v138, %v137
    %v150 = vpack.c.b16 %v140, %v139
    %v151 = vpack.c.b16 %v142, %v141
    %v152 = vpack.c.b16 %v144, %v143
    %161 = vmatprep.subr.bf16.mxu0 0
    %162 = vmatpush1.bf16.msra.mxu0 %v145
    %163 = vmatprep.subr.bf16.mxu0 0
    %164 = vmatpush1.bf16.msra.mxu0 %v146
    %165 = vmatprep.subr.bf16.mxu0 0
    %166 = vmatpush1.bf16.msra.mxu0 %v147
    %167 = vmatprep.subr.bf16.mxu0 0
    %168 = vmatpush1.bf16.msra.mxu0 %v148
    %169 = vmatprep.subr.bf16.mxu0 0
    %170 = vmatpush1.bf16.msra.mxu0 %v149
    %171 = vmatprep.subr.bf16.mxu0 0
    %172 = vmatpush1.bf16.msra.mxu0 %v150
    %173 = vmatprep.subr.bf16.mxu0 0
    %174 = vmatpush1.bf16.msra.mxu0 %v151
    %175 = vmatprep.subr.bf16.mxu0 0
    %176 = vmatpush1.bf16.msra.mxu0 %v152
    %177 = vmatprep.subr.bf16.mxu0 0
    %178 = vmatpush1.bf16.msra.mxu0 0
    %179 = vmatprep.subr.bf16.mxu0 0
    %180 = vmatpush1.bf16.msra.mxu0 0
    %181 = vmatprep.subr.bf16.mxu0 0
    %182 = vmatpush1.bf16.msra.mxu0 0
    %183 = vmatprep.subr.bf16.mxu0 0
    %184 = vmatpush1.bf16.msra.mxu0 0
    %185 = vmatprep.subr.bf16.mxu0 0
    %186 = vmatpush1.bf16.msra.mxu0 0
    %187 = vmatprep.subr.bf16.mxu0 0
    %188 = vmatpush1.bf16.msra.mxu0 0
    %189 = vmatprep.subr.bf16.mxu0 0
    %190 = vmatpush1.bf16.msra.mxu0 0
    %191 = vmatprep.subr.bf16.mxu0 0
    %192 = vmatpush1.bf16.msra.mxu0 0
    %193 = vmatprep.mubr.bf16.mxu0 0
    %194 = vmatmul.mubr.bf16.gmra.mrb[0].mxu0 %v96
    %v195 = vpop.f32.mrb[0].mxu0
    %v196 = vadd.f32 0.0, %v195
    %v197 = vpop.f32.mrb[0].mxu0
    %v198 = vpop.f32.mrb[0].mxu0
    %v199 = vadd.f32 0.0, %v198
    %v200 = vpop.f32.mrb[0].mxu0
    %201 = vdwg.mxu0
    %v202 = vpack.c.bf16 %v199, %v196
    %v203 = vld [vmem:[%s2] sm:$0x1]
    %v204 = vpack.c.bf16 %v203, %v203
    %v206 = vpack.i.b16 %v204, %v204
    %v208 = vlaneseq
    %v209 = vshrl.u32 %v208, 7
    %v210 = vsub.s32 0, %v209
    %v211 = vrot.slane %v206, %v210
    %v212 = vadd.bf16 %v202, %v211
    %v213 = vmul.bf16 %v212, 1009007652
    %v214 = vmax.bf16 %v212, %v213
    %v215 = vld [vmem:[#allocation7] sm:$0xf]
    %v216 = vld [vmem:[#allocation7 + $0x4] sm:$0xf]
    %v217 = vld [vmem:[#allocation7 + $0x8] sm:$0xf]
    %v218 = vld [vmem:[#allocation7 + $0xc] sm:$0xf]
    %v219 = vld [vmem:[#allocation7 + $0x10] sm:$0xf]
    %v220 = vld [vmem:[#allocation7 + $0x14] sm:$0xf]
    %v221 = vld [vmem:[#allocation7 + $0x18] sm:$0xf]
    %v222 = vld [vmem:[#allocation7 + $0x1c] sm:$0xf]
    %v223 = vld [vmem:[#allocation7 + $0x20] sm:$0xf]
    %v224 = vld [vmem:[#allocation7 + $0x24] sm:$0xf]
    %v225 = vld [vmem:[#allocation7 + $0x28] sm:$0xf]
    %v226 = vld [vmem:[#allocation7 + $0x2c] sm:$0xf]
    %v227 = vld [vmem:[#allocation7 + $0x30] sm:$0xf]
    %v228 = vld [vmem:[#allocation7 + $0x34] sm:$0xf]
    %v229 = vld [vmem:[#allocation7 + $0x38] sm:$0xf]
    %v230 = vld [vmem:[#allocation7 + $0x3c] sm:$0xf]
    %v231 = vld [vmem:[%s4] sm:$0x1]
    %v233 = vlaneseq
    %v234 = vshrl.u32 %v233, 7
    %v235 = vsub.s32 0, %v234
    %v236 = vrot.slane %v231, %v235
    %v254 = vunpack.c.l.b16 %v215
    %v255 = vunpack.c.l.b16 %v216
    %v256 = vunpack.c.l.b16 %v217
    %v257 = vunpack.c.l.b16 %v218
    %v258 = vunpack.c.l.b16 %v219
    %v259 = vunpack.c.l.b16 %v220
    %v260 = vunpack.c.l.b16 %v221
    %v261 = vunpack.c.l.b16 %v222
    %v262 = vunpack.c.l.b16 %v223
    %v263 = vunpack.c.l.b16 %v224
    %v264 = vunpack.c.l.b16 %v225
    %v265 = vunpack.c.l.b16 %v226
    %v266 = vunpack.c.l.b16 %v227
    %v267 = vunpack.c.l.b16 %v228
    %v268 = vunpack.c.l.b16 %v229
    %v269 = vunpack.c.l.b16 %v230
    %v270 = vpack.c.b16 %v255, %v254
    %v271 = vpack.c.b16 %v257, %v256
    %v272 = vpack.c.b16 %v259, %v258
    %v273 = vpack.c.b16 %v261, %v260
    %v274 = vpack.c.b16 %v263, %v262
    %v275 = vpack.c.b16 %v265, %v264
    %v276 = vpack.c.b16 %v267, %v266
    %v277 = vpack.c.b16 %v269, %v268
    %286 = vmatprep.subr.bf16.mxu0 0
    %287 = vmatpush1.bf16.msra.mxu0 %v270
    %288 = vmatprep.subr.bf16.mxu0 0
    %289 = vmatpush1.bf16.msra.mxu0 %v271
    %290 = vmatprep.subr.bf16.mxu0 0
    %291 = vmatpush1.bf16.msra.mxu0 %v272
    %292 = vmatprep.subr.bf16.mxu0 0
    %293 = vmatpush1.bf16.msra.mxu0 %v273
    %294 = vmatprep.subr.bf16.mxu0 0
    %295 = vmatpush1.bf16.msra.mxu0 %v274
    %296 = vmatprep.subr.bf16.mxu0 0
    %297 = vmatpush1.bf16.msra.mxu0 %v275
    %298 = vmatprep.subr.bf16.mxu0 0
    %299 = vmatpush1.bf16.msra.mxu0 %v276
    %300 = vmatprep.subr.bf16.mxu0 0
    %301 = vmatpush1.bf16.msra.mxu0 %v277
    %302 = vmatprep.subr.bf16.mxu0 0
    %303 = vmatpush1.bf16.msra.mxu0 0
    %304 = vmatprep.subr.bf16.mxu0 0
    %305 = vmatpush1.bf16.msra.mxu0 0
    %306 = vmatprep.subr.bf16.mxu0 0
    %307 = vmatpush1.bf16.msra.mxu0 0
    %308 = vmatprep.subr.bf16.mxu0 0
    %309 = vmatpush1.bf16.msra.mxu0 0
    %310 = vmatprep.subr.bf16.mxu0 0
    %311 = vmatpush1.bf16.msra.mxu0 0
    %312 = vmatprep.subr.bf16.mxu0 0
    %313 = vmatpush1.bf16.msra.mxu0 0
    %314 = vmatprep.subr.bf16.mxu0 0
    %315 = vmatpush1.bf16.msra.mxu0 0
    %316 = vmatprep.subr.bf16.mxu0 0
    %317 = vmatpush1.bf16.msra.mxu0 0
    %318 = vmatprep.mubr.bf16.mxu0 0
    %319 = vmatmul.mubr.bf16.gmra.mrb[0].mxu0 %v214
    %v320 = vpop.f32.mrb[0].mxu0
    %v321 = vadd.f32 %v236, %v320
    %v322 = vpop.f32.mrb[0].mxu0
    %v323 = vpop.f32.mrb[0].mxu0
    %v324 = vadd.f32 %v236, %v323
    %v325 = vpop.f32.mrb[0].mxu0
    %326 = vdwg.mxu0
    %v327 = vadd.f32 %v321, %v64
    %v328 = vadd.f32 %v324, %v65
    %329 = vst [vmem:[#allocation8] sm:$0xff] %v327
    %330 = vst [vmem:[#allocation8 + $0x8] sm:$0xff] %v328
    // Predicated region
    $region34: #{tpu_custom_call.1} parent=1 // pred_check
      _
    $region35: #{tpu_custom_call.1} parent=1 // pred_check_branch
      %332 = sbr.rel (0) target = $region37
    $region36: #{tpu_custom_call.1} parent=1 // pred_region
      %s334 = ssub.s32 256, 256
      %335 = vsyncadd [#allocation4], %s334
      %s336 = sshll.u32 [#allocation8], 4
      %s337 = int_to_ptr.vmem [resolvable:$true] %s336
      %342 = dma.vmem_to_hbm [thread:$0]  %s337, 256, %s5, [#allocation4], 128, 128, 8
    $region37: #{tpu_custom_call.1} parent=1 // pred_fallthru
      _
    // Predicated region
    $region38: #{tpu_custom_call.1} parent=1 // pred_check
      _
    $region39: #{tpu_custom_call.1} parent=1 // pred_check_branch
      %344 = sbr.rel (0) target = $region41
    $region40: #{tpu_custom_call.1} parent=1 // pred_region
      %345 = dma.done [#allocation4], 256
    $region41: #{tpu_custom_call.1} parent=1 // pred_fallthru
      _
    %346 = vsyncpa [#allocation3], 1
    %347 = vsyncpa [#allocation6], 1
    %348 = vsyncpa [#allocation4], 1

</llo_original>
